<compile_context>
chip_gen: v5e
topology: v5e:2x2
jax: 0.10.0
libtpu: 0.0.40
codegen_flags: <defaults>
</compile_context>

<pallas_src>
import math
import jax
import jax.numpy as jnp
from jax.experimental import pallas as pl
from jax.experimental.pallas import tpu as pltpu

# ---------------- model dims (small, consistent with the module) -------------
B = 2          # batch
S = 8          # seq_length
H = 32         # hidden_size
NH = 4         # heads_num
DH = H // NH   # attention_head_size
FF = 64        # feedforward_size
EPS = 1e-6     # layernorm_eps

# True  -> tanh-approx gelu (routes through the EUP slot; == "gelu_fast").
# False -> exact-erf gelu (bit-parity with torch F.gelu; needs erf lowering).
GELU_TANH_APPROX = True

# ---------------- packed-parameter layout: one (PACK_ROWS, 128) f32 buffer ----
# Every weight block starts on an 8-sublane boundary -> static row slices free.
PACK_COLS = 128
R_WQKV = 0                    # (H, 3H)  rows   0..31, cols 0..95 (Q pre-scaled)
R_BIAS = R_WQKV + H           # 8 bias rows, rows 32..39
ROW_BQKV = R_BIAS + 0         # (3H,)  (Q part pre-scaled)
ROW_BO   = R_BIAS + 1         # (H,)
ROW_LN1G = R_BIAS + 2
ROW_LN1B = R_BIAS + 3
ROW_BFF1 = R_BIAS + 4         # (FF,)
ROW_BFF2 = R_BIAS + 5
ROW_LN2G = R_BIAS + 6
ROW_LN2B = R_BIAS + 7
R_WO   = R_BIAS + 8           # (H, H)   rows  40..71
R_WFF1 = R_WO + H             # (H, FF)  rows  72..103
R_WFF2 = R_WFF1 + H           # (FF, H)  rows 104..167
PACK_ROWS = R_WFF2 + FF       # 168 rows total (multiple of 8)


def _transformer_layer_kernel(h_ref, m_ref, w_ref, o_ref):
    x = h_ref[...].reshape(S, H)        # (S, H) f32, this batch's tokens
    mask = m_ref[...].reshape(S, S)     # (S, S) additive mask for this batch

    # ---- static slices out of the single packed parameter buffer -----------
    wqkv = w_ref[R_WQKV:R_WQKV + H, 0:3 * H]          # (H, 3H)
    bqkv = w_ref[ROW_BQKV:ROW_BQKV + 1, 0:3 * H]      # (1, 3H)
    wo   = w_ref[R_WO:R_WO + H, 0:H]                  # (H, H)
    bo   = w_ref[ROW_BO:ROW_BO + 1, 0:H]              # (1, H)
    g1   = w_ref[ROW_LN1G:ROW_LN1G + 1, 0:H]
    b1   = w_ref[ROW_LN1B:ROW_LN1B + 1, 0:H]
    wff1 = w_ref[R_WFF1:R_WFF1 + H, 0:FF]             # (H, FF)
    bff1 = w_ref[ROW_BFF1:ROW_BFF1 + 1, 0:FF]
    wff2 = w_ref[R_WFF2:R_WFF2 + FF, 0:H]             # (FF, H)
    bff2 = w_ref[ROW_BFF2:ROW_BFF2 + 1, 0:H]
    g2   = w_ref[ROW_LN2G:ROW_LN2G + 1, 0:H]
    b2   = w_ref[ROW_LN2B:ROW_LN2B + 1, 0:H]

    # ---- fused QKV projection: one (S,H) @ (H,3H) MXU pass ------------------
    # The 1/sqrt(DH) attention scale is pre-folded into the Q columns.
    qkv = jnp.dot(x, wqkv, preferred_element_type=jnp.float32) + bqkv

    # ---- multi-headed self attention (static unrolled head loop) ------------
    ctxs = []
    for hd in range(NH):
        lo = hd * DH
        qh = qkv[:, lo:lo + DH]                       # (S, DH)
        kh = qkv[:, H + lo:H + lo + DH]               # (S, DH)
        vh = qkv[:, 2 * H + lo:2 * H + lo + DH]       # (S, DH)
        # QK^T via dot_general contracting on the feature axis: no explicit
        # kh.T transpose (transpose absorbed into the MXU operand feed).
        s = jax.lax.dot_general(qh, kh, (((1,), (1,)), ((), ())),
                                preferred_element_type=jnp.float32) + mask
        s = s - jnp.max(s, axis=-1, keepdims=True)
        p = jnp.exp(s)
        p = p / jnp.sum(p, axis=-1, keepdims=True)    # exact division (parity)
        ctxs.append(jnp.dot(p, vh, preferred_element_type=jnp.float32))
    # Lane-concat the 4 (S,DH) tiles (all inside one 128-lane tile) and do ONE
    # output projection instead of 4 tiny matmuls.
    ctx = jnp.concatenate(ctxs, axis=-1)              # (S, H)
    attn_out = jnp.dot(ctx, wo, preferred_element_type=jnp.float32) + bo

    # ---- dropout_1 identity (eval) ; residual + layer_norm_1 ---------------
    inter = attn_out + x
    mu = jnp.mean(inter, axis=-1, keepdims=True)
    var = jnp.mean(jnp.square(inter - mu), axis=-1, keepdims=True)
    inter = (inter - mu) * jax.lax.rsqrt(var + EPS) * g1 + b1

    # ---- feed forward: Linear -> gelu -> Linear ------------------------------
    ff = jnp.dot(inter, wff1, preferred_element_type=jnp.float32) + bff1
    ff = jax.nn.gelu(ff, approximate=GELU_TANH_APPROX)
    ff = jnp.dot(ff, wff2, preferred_element_type=jnp.float32) + bff2

    # ---- dropout_2 identity ; residual + layer_norm_2 ------------------------
    out = ff + inter
    mu2 = jnp.mean(out, axis=-1, keepdims=True)
    var2 = jnp.mean(jnp.square(out - mu2), axis=-1, keepdims=True)
    out = (out - mu2) * jax.lax.rsqrt(var2 + EPS) * g2 + b2

    o_ref[...] = out.reshape(1, S, H).astype(o_ref.dtype)


def transformer_layer(hidden, mask, packed_w):
    """hidden: (B,S,H) f32, mask: (B,1,S,S) additive -> (output, prev_attn_out=None)."""
    b, s, h = hidden.shape
    out = pl.pallas_call(
        _transformer_layer_kernel,
        out_shape=jax.ShapeDtypeStruct((b, s, h), hidden.dtype),
        grid_spec=pltpu.PrefetchScalarGridSpec(
            num_scalar_prefetch=0,
            grid=(b,),                                # batch axis, megacore-parallel
            in_specs=[
                pl.BlockSpec((1, s, h), lambda i: (i, 0, 0)),
                pl.BlockSpec((1, 1, s, s), lambda i: (i, 0, 0, 0)),
                # same block every step -> params stay VMEM-resident (1 DMA)
                pl.BlockSpec((PACK_ROWS, PACK_COLS), lambda i: (0, 0)),
            ],
            out_specs=pl.BlockSpec((1, s, h), lambda i: (i, 0, 0)),
        ),
        compiler_params=pltpu.CompilerParams(
            dimension_semantics=("parallel",)),
    )(hidden, mask, packed_w)
    # has_residual_attention=False -> prev_attn_out is None
    return out, None


def pack_params(wq, bq, wk, bk, wv, bv, wo, bo, ln1_g, ln1_b,
                w_ff1, b_ff1, w_ff2, b_ff2, ln2_g, ln2_b):
    """Parameter-prep-time packing (done once): fold the 1/sqrt(DH) scale into
    the Q columns and lay every tensor out in one (PACK_ROWS, 128) buffer."""
    scale = 1.0 / math.sqrt(DH)
    wqkv = jnp.concatenate([wq * scale, wk, wv], axis=1)     # (H, 3H)
    bqkv = jnp.concatenate([bq * scale, bk, bv], axis=0)     # (3H,)
    buf = jnp.zeros((PACK_ROWS, PACK_COLS), jnp.float32)
    buf = buf.at[R_WQKV:R_WQKV + H, 0:3 * H].set(wqkv)
    buf = buf.at[ROW_BQKV, 0:3 * H].set(bqkv)
    buf = buf.at[ROW_BO, 0:H].set(bo)
    buf = buf.at[ROW_LN1G, 0:H].set(ln1_g)
    buf = buf.at[ROW_LN1B, 0:H].set(ln1_b)
    buf = buf.at[ROW_BFF1, 0:FF].set(b_ff1)
    buf = buf.at[ROW_BFF2, 0:H].set(b_ff2)
    buf = buf.at[ROW_LN2G, 0:H].set(ln2_g)
    buf = buf.at[ROW_LN2B, 0:H].set(ln2_b)
    buf = buf.at[R_WO:R_WO + H, 0:H].set(wo)
    buf = buf.at[R_WFF1:R_WFF1 + H, 0:FF].set(w_ff1)
    buf = buf.at[R_WFF2:R_WFF2 + FF, 0:H].set(w_ff2)
    return buf


def init_params(key):
    ks = jax.random.split(key, 6)
    std = 0.02

    def lin(k, fan_in, fan_out):
        return (std * jax.random.normal(k, (fan_in, fan_out), jnp.float32),
                jnp.zeros((fan_out,), jnp.float32))

    wq, bq = lin(ks[0], H, H)
    wk, bk = lin(ks[1], H, H)
    wv, bv = lin(ks[2], H, H)
    wo, bo = lin(ks[3], H, H)
    w_ff1, b_ff1 = lin(ks[4], H, FF)
    w_ff2, b_ff2 = lin(ks[5], FF, H)
    ones = jnp.ones((H,), jnp.float32)
    zeros = jnp.zeros((H,), jnp.float32)

    raw = dict(wq=wq, bq=bq, wk=wk, bk=bk, wv=wv, bv=bv, wo=wo, bo=bo,
               ln1_g=ones, ln1_b=zeros, w_ff1=w_ff1, b_ff1=b_ff1,
               w_ff2=w_ff2, b_ff2=b_ff2, ln2_g=ones, ln2_b=zeros)
    packed = pack_params(wq, bq, wk, bk, wv, bv, wo, bo, ones, zeros,
                         w_ff1, b_ff1, w_ff2, b_ff2, ones, zeros)
    return raw, packed


def reference_layer(hidden, mask, p):
    """Pure-JAX reference (same math) for a correctness cross-check."""
    scale = 1.0 / math.sqrt(DH)
    x = hidden                                             # (B,S,H)
    q = (x @ p["wq"] + p["bq"]) * scale
    k = x @ p["wk"] + p["bk"]
    v = x @ p["wv"] + p["bv"]

    def split(a):  # (B,S,H) -> (B,NH,S,DH)
        return a.reshape(B, S, NH, DH).transpose(0, 2, 1, 3)

    qh, kh, vh = split(q), split(k), split(v)
    s = jnp.einsum("bhqd,bhkd->bhqk", qh, kh) + mask       # (B,NH,S,S)
    pr = jax.nn.softmax(s, axis=-1)
    ctx = jnp.einsum("bhqk,bhkd->bhqd", pr, vh)
    ctx = ctx.transpose(0, 2, 1, 3).reshape(B, S, H)
    attn = ctx @ p["wo"] + p["bo"]

    def ln(a, g, b):
        mu = jnp.mean(a, -1, keepdims=True)
        var = jnp.mean(jnp.square(a - mu), -1, keepdims=True)
        return (a - mu) * jax.lax.rsqrt(var + EPS) * g + b

    inter = ln(attn + x, p["ln1_g"], p["ln1_b"])
    ff = jax.nn.gelu(inter @ p["w_ff1"] + p["b_ff1"], approximate=GELU_TANH_APPROX)
    ff = ff @ p["w_ff2"] + p["b_ff2"]
    return ln(ff + inter, p["ln2_g"], p["ln2_b"])


if __name__ == "__main__":
    key = jax.random.PRNGKey(0)
    k_h, k_p = jax.random.split(key)

    hidden = jax.random.normal(k_h, (B, S, H), jnp.float32)
    # causal additive mask: 0 where attending, -10000 where masked
    causal = jnp.tril(jnp.ones((S, S), jnp.float32))
    mask = ((1.0 - causal) * -10000.0)[None, None, :, :]
    mask = jnp.broadcast_to(mask, (B, 1, S, S))

    raw_params, packed = init_params(k_p)

    out, prev_attn = transformer_layer(hidden, mask, packed)
    out = jax.block_until_ready(out)
    assert out.shape == (B, S, H)
    assert jnp.all(jnp.isfinite(out))

    ref = reference_layer(hidden, mask, raw_params)
    assert jnp.allclose(out, ref, atol=1e-3, rtol=1e-3)

    # TODO(synk): dropout is eval-mode identity; position_bias / alibi / rotary
    # freqs_cis / residual-attention paths are not implemented (module defaults).
    print("KERNEL_OK")
</pallas_src>

<mosaic_0001>
module attributes {stable_mosaic.version = 11 : i64} {
  func.func @_transformer_layer_kernel(%arg0: i32, %arg1: memref<1x8x32xf32, #tpu.memory_space<vmem>>, %arg2: memref<1x1x8x8xf32, #tpu.memory_space<vmem>>, %arg3: memref<168x128xf32, #tpu.memory_space<vmem>>, %arg4: memref<1x8x32xf32, #tpu.memory_space<vmem>>) attributes {dimension_semantics = [#tpu.dimension_semantics<parallel>], iteration_bounds = array<i64: 2>, scalar_prefetch = 0 : i64, scratch_operands = 0 : i64, tpu.core_type = #tpu.core_type<tc>, window_params = [{transform_indices = @transform_0, window_bounds = array<i64: 1, 8, 32>}, {transform_indices = @transform_1, window_bounds = array<i64: 1, 1, 8, 8>}, {pipeline_mode = #tpu.pipeline_mode<synchronous>, transform_indices = @transform_2, window_bounds = array<i64: 168, 128>}, {transform_indices = @transform_3, window_bounds = array<i64: 1, 8, 32>}]} {
    %c0 = arith.constant 0 : index
    %c0_0 = arith.constant 0 : index
    %c0_1 = arith.constant 0 : index
    %0 = vector.load %arg1[%c0, %c0_0, %c0_1] : memref<1x8x32xf32, #tpu.memory_space<vmem>>, vector<1x8x32xf32>
    %1 = vector.shape_cast %0 : vector<1x8x32xf32> to vector<8x32xf32>
    %c0_2 = arith.constant 0 : index
    %c0_3 = arith.constant 0 : index
    %c0_4 = arith.constant 0 : index
    %c0_5 = arith.constant 0 : index
    %2 = vector.load %arg2[%c0_2, %c0_3, %c0_4, %c0_5] : memref<1x1x8x8xf32, #tpu.memory_space<vmem>>, vector<1x1x8x8xf32>
    %3 = vector.shape_cast %2 : vector<1x1x8x8xf32> to vector<8x8xf32>
    %c0_6 = arith.constant 0 : index
    %c0_7 = arith.constant 0 : index
    %4 = vector.load %arg3[%c0_6, %c0_7] : memref<168x128xf32, #tpu.memory_space<vmem>>, vector<32x96xf32>
    %c32 = arith.constant 32 : index
    %c0_8 = arith.constant 0 : index
    %5 = vector.load %arg3[%c32, %c0_8] : memref<168x128xf32, #tpu.memory_space<vmem>>, vector<1x96xf32>
    %c40 = arith.constant 40 : index
    %c0_9 = arith.constant 0 : index
    %6 = vector.load %arg3[%c40, %c0_9] : memref<168x128xf32, #tpu.memory_space<vmem>>, vector<32x32xf32>
    %c33 = arith.constant 33 : index
    %c0_10 = arith.constant 0 : index
    %7 = vector.load %arg3[%c33, %c0_10] : memref<168x128xf32, #tpu.memory_space<vmem>>, vector<1x32xf32>
    %c34 = arith.constant 34 : index
    %c0_11 = arith.constant 0 : index
    %8 = vector.load %arg3[%c34, %c0_11] : memref<168x128xf32, #tpu.memory_space<vmem>>, vector<1x32xf32>
    %c35 = arith.constant 35 : index
    %c0_12 = arith.constant 0 : index
    %9 = vector.load %arg3[%c35, %c0_12] : memref<168x128xf32, #tpu.memory_space<vmem>>, vector<1x32xf32>
    %c72 = arith.constant 72 : index
    %c0_13 = arith.constant 0 : index
    %10 = vector.load %arg3[%c72, %c0_13] : memref<168x128xf32, #tpu.memory_space<vmem>>, vector<32x64xf32>
    %c36 = arith.constant 36 : index
    %c0_14 = arith.constant 0 : index
    %11 = vector.load %arg3[%c36, %c0_14] : memref<168x128xf32, #tpu.memory_space<vmem>>, vector<1x64xf32>
    %c104 = arith.constant 104 : index
    %c0_15 = arith.constant 0 : index
    %12 = vector.load %arg3[%c104, %c0_15] : memref<168x128xf32, #tpu.memory_space<vmem>>, vector<64x32xf32>
    %c37 = arith.constant 37 : index
    %c0_16 = arith.constant 0 : index
    %13 = vector.load %arg3[%c37, %c0_16] : memref<168x128xf32, #tpu.memory_space<vmem>>, vector<1x32xf32>
    %c38 = arith.constant 38 : index
    %c0_17 = arith.constant 0 : index
    %14 = vector.load %arg3[%c38, %c0_17] : memref<168x128xf32, #tpu.memory_space<vmem>>, vector<1x32xf32>
    %c39 = arith.constant 39 : index
    %c0_18 = arith.constant 0 : index
    %15 = vector.load %arg3[%c39, %c0_18] : memref<168x128xf32, #tpu.memory_space<vmem>>, vector<1x32xf32>
    %cst = arith.constant dense<0.000000e+00> : vector<8x96xf32>
    %16 = tpu.matmul %1, %4, %cst {dimension_numbers = #tpu.dot_dimension_numbers<[1], [0], [0], [1], [0, 0, 1, 1], [], []>} : vector<8x32xf32>, vector<32x96xf32>, vector<8x96xf32> -> vector<8x96xf32>
    %17 = vector.broadcast %5 : vector<1x96xf32> to vector<8x96xf32>
    %18 = arith.addf %16, %17 : vector<8x96xf32>
    %19 = vector.extract_strided_slice %18 {offsets = [0, 0], sizes = [8, 8], strides = [1, 1]} : vector<8x96xf32> to vector<8x8xf32>
    %20 = vector.extract_strided_slice %18 {offsets = [0, 32], sizes = [8, 8], strides = [1, 1]} : vector<8x96xf32> to vector<8x8xf32>
    %21 = vector.extract_strided_slice %18 {offsets = [0, 64], sizes = [8, 8], strides = [1, 1]} : vector<8x96xf32> to vector<8x8xf32>
    %cst_19 = arith.constant dense<0.000000e+00> : vector<8x8xf32>
    %22 = tpu.matmul %19, %20, %cst_19 {dimension_numbers = #tpu.dot_dimension_numbers<[1], [1], [0], [0], [0, 0, 1, 0], [], []>} : vector<8x8xf32>, vector<8x8xf32>, vector<8x8xf32> -> vector<8x8xf32>
    %23 = arith.addf %22, %3 : vector<8x8xf32>
    %cst_20 = arith.constant dense<0xFF800000> : vector<8xf32>
    %24 = vector.multi_reduction <maximumf>, %23, %cst_20 [1] : vector<8x8xf32> to vector<8xf32>
    %25 = vector.shape_cast %24 : vector<8xf32> to vector<8x1xf32>
    %26 = vector.broadcast %25 : vector<8x1xf32> to vector<8x8xf32>
    %27 = arith.subf %23, %26 : vector<8x8xf32>
    %28 = math.exp %27 : vector<8x8xf32>
    %cst_21 = arith.constant dense<0.000000e+00> : vector<8xf32>
    %29 = vector.multi_reduction <add>, %28, %cst_21 [1] : vector<8x8xf32> to vector<8xf32>
    %30 = vector.shape_cast %29 : vector<8xf32> to vector<8x1xf32>
    %31 = vector.broadcast %30 : vector<8x1xf32> to vector<8x8xf32>
    %32 = arith.divf %28, %31 : vector<8x8xf32>
    %cst_22 = arith.constant dense<0.000000e+00> : vector<8x8xf32>
    %33 = tpu.matmul %32, %21, %cst_22 {dimension_numbers = #tpu.dot_dimension_numbers<[1], [0], [0], [1], [0, 0, 1, 1], [], []>} : vector<8x8xf32>, vector<8x8xf32>, vector<8x8xf32> -> vector<8x8xf32>
    %34 = vector.extract_strided_slice %18 {offsets = [0, 8], sizes = [8, 8], strides = [1, 1]} : vector<8x96xf32> to vector<8x8xf32>
    %35 = vector.extract_strided_slice %18 {offsets = [0, 40], sizes = [8, 8], strides = [1, 1]} : vector<8x96xf32> to vector<8x8xf32>
    %36 = vector.extract_strided_slice %18 {offsets = [0, 72], sizes = [8, 8], strides = [1, 1]} : vector<8x96xf32> to vector<8x8xf32>
    %cst_23 = arith.constant dense<0.000000e+00> : vector<8x8xf32>
    %37 = tpu.matmul %34, %35, %cst_23 {dimension_numbers = #tpu.dot_dimension_numbers<[1], [1], [0], [0], [0, 0, 1, 0], [], []>} : vector<8x8xf32>, vector<8x8xf32>, vector<8x8xf32> -> vector<8x8xf32>
    %38 = arith.addf %37, %3 : vector<8x8xf32>
    %cst_24 = arith.constant dense<0xFF800000> : vector<8xf32>
    %39 = vector.multi_reduction <maximumf>, %38, %cst_24 [1] : vector<8x8xf32> to vector<8xf32>
    %40 = vector.shape_cast %39 : vector<8xf32> to vector<8x1xf32>
    %41 = vector.broadcast %40 : vector<8x1xf32> to vector<8x8xf32>
    %42 = arith.subf %38, %41 : vector<8x8xf32>
    %43 = math.exp %42 : vector<8x8xf32>
    %cst_25 = arith.constant dense<0.000000e+00> : vector<8xf32>
    %44 = vector.multi_reduction <add>, %43, %cst_25 [1] : vector<8x8xf32> to vector<8xf32>
    %45 = vector.shape_cast %44 : vector<8xf32> to vector<8x1xf32>
    %46 = vector.broadcast %45 : vector<8x1xf32> to vector<8x8xf32>
    %47 = arith.divf %43, %46 : vector<8x8xf32>
    %cst_26 = arith.constant dense<0.000000e+00> : vector<8x8xf32>
    %48 = tpu.matmul %47, %36, %cst_26 {dimension_numbers = #tpu.dot_dimension_numbers<[1], [0], [0], [1], [0, 0, 1, 1], [], []>} : vector<8x8xf32>, vector<8x8xf32>, vector<8x8xf32> -> vector<8x8xf32>
    %49 = vector.extract_strided_slice %18 {offsets = [0, 16], sizes = [8, 8], strides = [1, 1]} : vector<8x96xf32> to vector<8x8xf32>
    %50 = vector.extract_strided_slice %18 {offsets = [0, 48], sizes = [8, 8], strides = [1, 1]} : vector<8x96xf32> to vector<8x8xf32>
    %51 = vector.extract_strided_slice %18 {offsets = [0, 80], sizes = [8, 8], strides = [1, 1]} : vector<8x96xf32> to vector<8x8xf32>
    %cst_27 = arith.constant dense<0.000000e+00> : vector<8x8xf32>
    %52 = tpu.matmul %49, %50, %cst_27 {dimension_numbers = #tpu.dot_dimension_numbers<[1], [1], [0], [0], [0, 0, 1, 0], [], []>} : vector<8x8xf32>, vector<8x8xf32>, vector<8x8xf32> -> vector<8x8xf32>
    %53 = arith.addf %52, %3 : vector<8x8xf32>
    %cst_28 = arith.constant dense<0xFF800000> : vector<8xf32>
    %54 = vector.multi_reduction <maximumf>, %53, %cst_28 [1] : vector<8x8xf32> to vector<8xf32>
    %55 = vector.shape_cast %54 : vector<8xf32> to vector<8x1xf32>
    %56 = vector.broadcast %55 : vector<8x1xf32> to vector<8x8xf32>
    %57 = arith.subf %53, %56 : vector<8x8xf32>
    %58 = math.exp %57 : vector<8x8xf32>
    %cst_29 = arith.constant dense<0.000000e+00> : vector<8xf32>
    %59 = vector.multi_reduction <add>, %58, %cst_29 [1] : vector<8x8xf32> to vector<8xf32>
    %60 = vector.shape_cast %59 : vector<8xf32> to vector<8x1xf32>
    %61 = vector.broadcast %60 : vector<8x1xf32> to vector<8x8xf32>
    %62 = arith.divf %58, %61 : vector<8x8xf32>
    %cst_30 = arith.constant dense<0.000000e+00> : vector<8x8xf32>
    %63 = tpu.matmul %62, %51, %cst_30 {dimension_numbers = #tpu.dot_dimension_numbers<[1], [0], [0], [1], [0, 0, 1, 1], [], []>} : vector<8x8xf32>, vector<8x8xf32>, vector<8x8xf32> -> vector<8x8xf32>
    %64 = vector.extract_strided_slice %18 {offsets = [0, 24], sizes = [8, 8], strides = [1, 1]} : vector<8x96xf32> to vector<8x8xf32>
    %65 = vector.extract_strided_slice %18 {offsets = [0, 56], sizes = [8, 8], strides = [1, 1]} : vector<8x96xf32> to vector<8x8xf32>
    %66 = vector.extract_strided_slice %18 {offsets = [0, 88], sizes = [8, 8], strides = [1, 1]} : vector<8x96xf32> to vector<8x8xf32>
    %cst_31 = arith.constant dense<0.000000e+00> : vector<8x8xf32>
    %67 = tpu.matmul %64, %65, %cst_31 {dimension_numbers = #tpu.dot_dimension_numbers<[1], [1], [0], [0], [0, 0, 1, 0], [], []>} : vector<8x8xf32>, vector<8x8xf32>, vector<8x8xf32> -> vector<8x8xf32>
    %68 = arith.addf %67, %3 : vector<8x8xf32>
    %cst_32 = arith.constant dense<0xFF800000> : vector<8xf32>
    %69 = vector.multi_reduction <maximumf>, %68, %cst_32 [1] : vector<8x8xf32> to vector<8xf32>
    %70 = vector.shape_cast %69 : vector<8xf32> to vector<8x1xf32>
    %71 = vector.broadcast %70 : vector<8x1xf32> to vector<8x8xf32>
    %72 = arith.subf %68, %71 : vector<8x8xf32>
    %73 = math.exp %72 : vector<8x8xf32>
    %cst_33 = arith.constant dense<0.000000e+00> : vector<8xf32>
    %74 = vector.multi_reduction <add>, %73, %cst_33 [1] : vector<8x8xf32> to vector<8xf32>
    %75 = vector.shape_cast %74 : vector<8xf32> to vector<8x1xf32>
    %76 = vector.broadcast %75 : vector<8x1xf32> to vector<8x8xf32>
    %77 = arith.divf %73, %76 : vector<8x8xf32>
    %cst_34 = arith.constant dense<0.000000e+00> : vector<8x8xf32>
    %78 = tpu.matmul %77, %66, %cst_34 {dimension_numbers = #tpu.dot_dimension_numbers<[1], [0], [0], [1], [0, 0, 1, 1], [], []>} : vector<8x8xf32>, vector<8x8xf32>, vector<8x8xf32> -> vector<8x8xf32>
    %79 = tpu.concatenate %33, %48, %63, %78 in 1 : vector<8x8xf32>, vector<8x8xf32>, vector<8x8xf32>, vector<8x8xf32> -> vector<8x32xf32>
    %cst_35 = arith.constant dense<0.000000e+00> : vector<8x32xf32>
    %80 = tpu.matmul %79, %6, %cst_35 {dimension_numbers = #tpu.dot_dimension_numbers<[1], [0], [0], [1], [0, 0, 1, 1], [], []>} : vector<8x32xf32>, vector<32x32xf32>, vector<8x32xf32> -> vector<8x32xf32>
    %81 = vector.broadcast %7 : vector<1x32xf32> to vector<8x32xf32>
    %82 = arith.addf %80, %81 : vector<8x32xf32>
    %83 = arith.addf %82, %1 : vector<8x32xf32>
    %cst_36 = arith.constant dense<0.000000e+00> : vector<8xf32>
    %84 = vector.multi_reduction <add>, %83, %cst_36 [1] : vector<8x32xf32> to vector<8xf32>
    %85 = vector.shape_cast %84 : vector<8xf32> to vector<8x1xf32>
    %cst_37 = arith.constant 3.200000e+01 : f32
    %86 = vector.broadcast %cst_37 : f32 to vector<8x1xf32>
    %87 = arith.divf %85, %86 : vector<8x1xf32>
    %88 = vector.broadcast %87 : vector<8x1xf32> to vector<8x32xf32>
    %89 = arith.subf %83, %88 : vector<8x32xf32>
    %90 = arith.mulf %89, %89 : vector<8x32xf32>
    %cst_38 = arith.constant dense<0.000000e+00> : vector<8xf32>
    %91 = vector.multi_reduction <add>, %90, %cst_38 [1] : vector<8x32xf32> to vector<8xf32>
    %92 = vector.shape_cast %91 : vector<8xf32> to vector<8x1xf32>
    %cst_39 = arith.constant 3.200000e+01 : f32
    %93 = vector.broadcast %cst_39 : f32 to vector<8x1xf32>
    %94 = arith.divf %92, %93 : vector<8x1xf32>
    %95 = vector.broadcast %87 : vector<8x1xf32> to vector<8x32xf32>
    %96 = arith.subf %83, %95 : vector<8x32xf32>
    %cst_40 = arith.constant 9.99999997E-7 : f32
    %97 = vector.broadcast %cst_40 : f32 to vector<8x1xf32>
    %98 = arith.addf %94, %97 : vector<8x1xf32>
    %99 = math.rsqrt %98 : vector<8x1xf32>
    %100 = vector.broadcast %99 : vector<8x1xf32> to vector<8x32xf32>
    %101 = arith.mulf %96, %100 : vector<8x32xf32>
    %102 = vector.broadcast %8 : vector<1x32xf32> to vector<8x32xf32>
    %103 = arith.mulf %101, %102 : vector<8x32xf32>
    %104 = vector.broadcast %9 : vector<1x32xf32> to vector<8x32xf32>
    %105 = arith.addf %103, %104 : vector<8x32xf32>
    %cst_41 = arith.constant dense<0.000000e+00> : vector<8x64xf32>
    %106 = tpu.matmul %105, %10, %cst_41 {dimension_numbers = #tpu.dot_dimension_numbers<[1], [0], [0], [1], [0, 0, 1, 1], [], []>} : vector<8x32xf32>, vector<32x64xf32>, vector<8x64xf32> -> vector<8x64xf32>
    %107 = vector.broadcast %11 : vector<1x64xf32> to vector<8x64xf32>
    %108 = arith.addf %106, %107 : vector<8x64xf32>
    %109 = arith.mulf %108, %108 : vector<8x64xf32>
    %110 = arith.mulf %108, %109 : vector<8x64xf32>
    %cst_42 = arith.constant 4.471500e-02 : f32
    %111 = vector.broadcast %cst_42 : f32 to vector<8x64xf32>
    %112 = arith.mulf %111, %110 : vector<8x64xf32>
    %113 = arith.addf %108, %112 : vector<8x64xf32>
    %cst_43 = arith.constant 0.797884583 : f32
    %114 = vector.broadcast %cst_43 : f32 to vector<8x64xf32>
    %115 = arith.mulf %114, %113 : vector<8x64xf32>
    %116 = math.tanh %115 : vector<8x64xf32>
    %cst_44 = arith.constant 1.000000e+00 : f32
    %117 = vector.broadcast %cst_44 : f32 to vector<8x64xf32>
    %118 = arith.addf %117, %116 : vector<8x64xf32>
    %cst_45 = arith.constant 5.000000e-01 : f32
    %119 = vector.broadcast %cst_45 : f32 to vector<8x64xf32>
    %120 = arith.mulf %119, %118 : vector<8x64xf32>
    %121 = arith.mulf %108, %120 : vector<8x64xf32>
    %cst_46 = arith.constant dense<0.000000e+00> : vector<8x32xf32>
    %122 = tpu.matmul %121, %12, %cst_46 {dimension_numbers = #tpu.dot_dimension_numbers<[1], [0], [0], [1], [0, 0, 1, 1], [], []>} : vector<8x64xf32>, vector<64x32xf32>, vector<8x32xf32> -> vector<8x32xf32>
    %123 = vector.broadcast %13 : vector<1x32xf32> to vector<8x32xf32>
    %124 = arith.addf %122, %123 : vector<8x32xf32>
    %125 = arith.addf %124, %105 : vector<8x32xf32>
    %cst_47 = arith.constant dense<0.000000e+00> : vector<8xf32>
    %126 = vector.multi_reduction <add>, %125, %cst_47 [1] : vector<8x32xf32> to vector<8xf32>
    %127 = vector.shape_cast %126 : vector<8xf32> to vector<8x1xf32>
    %cst_48 = arith.constant 3.200000e+01 : f32
    %128 = vector.broadcast %cst_48 : f32 to vector<8x1xf32>
    %129 = arith.divf %127, %128 : vector<8x1xf32>
    %130 = vector.broadcast %129 : vector<8x1xf32> to vector<8x32xf32>
    %131 = arith.subf %125, %130 : vector<8x32xf32>
    %132 = arith.mulf %131, %131 : vector<8x32xf32>
    %cst_49 = arith.constant dense<0.000000e+00> : vector<8xf32>
    %133 = vector.multi_reduction <add>, %132, %cst_49 [1] : vector<8x32xf32> to vector<8xf32>
    %134 = vector.shape_cast %133 : vector<8xf32> to vector<8x1xf32>
    %cst_50 = arith.constant 3.200000e+01 : f32
    %135 = vector.broadcast %cst_50 : f32 to vector<8x1xf32>
    %136 = arith.divf %134, %135 : vector<8x1xf32>
    %137 = vector.broadcast %129 : vector<8x1xf32> to vector<8x32xf32>
    %138 = arith.subf %125, %137 : vector<8x32xf32>
    %cst_51 = arith.constant 9.99999997E-7 : f32
    %139 = vector.broadcast %cst_51 : f32 to vector<8x1xf32>
    %140 = arith.addf %136, %139 : vector<8x1xf32>
    %141 = math.rsqrt %140 : vector<8x1xf32>
    %142 = vector.broadcast %141 : vector<8x1xf32> to vector<8x32xf32>
    %143 = arith.mulf %138, %142 : vector<8x32xf32>
    %144 = vector.broadcast %14 : vector<1x32xf32> to vector<8x32xf32>
    %145 = arith.mulf %143, %144 : vector<8x32xf32>
    %146 = vector.broadcast %15 : vector<1x32xf32> to vector<8x32xf32>
    %147 = arith.addf %145, %146 : vector<8x32xf32>
    %148 = vector.shape_cast %147 : vector<8x32xf32> to vector<1x8x32xf32>
    %c0_52 = arith.constant 0 : index
    %c0_53 = arith.constant 0 : index
    %c0_54 = arith.constant 0 : index
    %149 = vector.load %arg4[%c0_52, %c0_53, %c0_54] : memref<1x8x32xf32, #tpu.memory_space<vmem>>, vector<1x8x32xf32>
    tpu.vector_store %arg4[%c0_52, %c0_53, %c0_54], %148 {strides = array<i32>} : memref<1x8x32xf32, #tpu.memory_space<vmem>>, vector<1x8x32xf32>,
    return
  }
  func.func @transform_0(%arg0: i32) -> (i32, i32, i32) {
    %c0_i32 = arith.constant 0 : i32
    %c0_i32_0 = arith.constant 0 : i32
    %c0_i32_1 = arith.constant 0 : i32
    return %arg0, %c0_i32, %c0_i32_0 : i32, i32, i32
  }
  func.func @transform_1(%arg0: i32) -> (i32, i32, i32, i32) {
    %c0_i32 = arith.constant 0 : i32
    %c0_i32_0 = arith.constant 0 : i32
    %c0_i32_1 = arith.constant 0 : i32
    %c0_i32_2 = arith.constant 0 : i32
    return %arg0, %c0_i32, %c0_i32_0, %c0_i32_1 : i32, i32, i32, i32
  }
  func.func @transform_2(%arg0: i32) -> (i32, i32) {
    %c0_i32 = arith.constant 0 : i32
    %c0_i32_0 = arith.constant 0 : i32
    %c0_i32_1 = arith.constant 0 : i32
    return %c0_i32, %c0_i32_0 : i32, i32
  }
  func.func @transform_3(%arg0: i32) -> (i32, i32, i32) {
    %c0_i32 = arith.constant 0 : i32
    %c0_i32_0 = arith.constant 0 : i32
    %c0_i32_1 = arith.constant 0 : i32
    return %arg0, %c0_i32, %c0_i32_0 : i32, i32, i32
  }
}

</mosaic_0001>

<llo_original>
// kernel: tpu_custom_call.1
$region0: #{tpu_custom_call.1}
  #allocation0 [shape = 'u32[]', space=smem, size = 0x4, offset = 0x4, fixed_abs, tag = 'smem constant byte address 0x4 - core index']
  #allocation1 [shape = 'u32[72,128]{1,0:T(1,128)}', space=vmem, size = 0x9000, scoped, tag = 'internal scratch']
  %s0 = inlined_call_operand.hbm [shape: f32[2,8,32], index: 0, kind: input, shape index: {}]
  %s1 = inlined_call_operand.hbm [shape: f32[2,1,8,8], index: 1, kind: input, shape index: {}]
  %s2 = inlined_call_operand.hbm [shape: f32[168,128], index: 2, kind: input, shape index: {}]
  %s3 = inlined_call_operand.hbm [shape: f32[2,8,32], index: 3, kind: output, shape index: {}]
  %s4 = sld [smem:[#allocation0]]
  $region57: #{tpu_custom_call.1} parent=0
    _
  %s6 = ssub.s32 1, %s4
  %s7 = scalar_select 0, %s6, %s4
  $region1: #{tpu_custom_call.1} parent=0
    #allocation2 [shape = 'u8[8192]{0}', space=vmem, size = 0x2000, scoped, tag = 'input window, operand 0']
    #allocation3 [shape = 's32[2]{0}', space=sflag, size = 0x8, scoped, tag = 'scoped memory for tpu_custom_call.1']
    #allocation4 [shape = 's32[2]{0}', space=sflag, size = 0x8, scoped, tag = 'scoped memory for tpu_custom_call.1']
    #allocation5 [shape = 'u8[8192]{0}', space=vmem, size = 0x2000, scoped, tag = 'input window, operand 1']
    #allocation6 [shape = 's32[2]{0}', space=sflag, size = 0x8, scoped, tag = 'scoped memory for tpu_custom_call.1']
    #allocation7 [shape = 'u8[86016]{0}', space=vmem, size = 0x15000, scoped, tag = 'input window, operand 2, single buffered']
    #allocation8 [shape = 'u8[8192]{0}', space=vmem, size = 0x2000, scoped, tag = 'output window, operand 0']
    %8 = vsyncpa [#allocation3], 0
    %s9 = scalar_lea.sflag [#allocation3], 1
    %10 = vsyncpa %s9, 0
    %11 = vsyncpa [#allocation6], 0
    %s12 = scalar_lea.sflag [#allocation6], 1
    %13 = vsyncpa %s12, 0
    %14 = vsyncpa [#allocation4], 0
    %s15 = scalar_lea.sflag [#allocation4], 1
    %16 = vsyncpa %s15, 0
    loop: start=0, step=1, limit=4
    $region2: #{tpu_custom_call.1} parent=1 // loop_pre_header
      _
    $region3: #{tpu_custom_call.1} parent=1 // loop_header
      %s18 = sphi 0, %s22
      %p19 = scmp.ge.s32.totalorder %s18, 4
      %s28 = sphi 0, %s30
      %s31 = sphi 0, %s28
      %s32 = sphi 0, %s31
      %s48 = sphi 0, %s32
      %s54 = sphi 0, %s56
      %s57 = sphi 0, %s54
      %s58 = sphi 0, %s57
      %s74 = sphi 0, %s58
      %s78 = sphi 0, %s78
      %s80 = sphi 0, %s78
      %s81 = sphi 0, %s80
      %s95 = sphi 0, %s81
      %s101 = sphi 0, %s103
      %s104 = sphi 0, %s101
      %s105 = sphi 0, %s104
      %s121 = sphi 0, %s105
    $region4: #{tpu_custom_call.1} parent=1 // loop_header_branch
      %21 = sbr.rel (%p19) target = $region8
    $region5: #{tpu_custom_call.1} parent=1 // loop_body
      %s23 = ssub.s32 %s18, 1
      %s24 = ssub.s32 %s18, 2
      %s25 = sadd.s32 %s18, 1
      %s26 = ssub.s32 %s18, %s25
      %p27 = scmp.eq.s32.totalorder %s26, 0
      %s29 = sadd.s32 %s28, 1
      %s30 = scalar_select %p27, %s28, %s29
      %p33 = pneg %p27
      %p34 = scmp.eq.s32.totalorder %s18, 1
      %p35 = por %p33, %p34
      %p36 = scmp.ne.s32.totalorder %s28, %s31
      %p37 = scmp.eq.s32.totalorder %s18, 0
      %p38 = por %p36, %p37
      %p39 = scmp.ne.s32.totalorder %s28, %s31
      %p40 = scmp.eq.s32.totalorder %s23, 1
      %p41 = por %p39, %p40
      %p42 = scmp.ne.s32.totalorder %s31, %s32
      %p43 = scmp.eq.s32.totalorder %s23, 0
      %p44 = por %p42, %p43
      %p45 = scmp.ne.s32.totalorder %s31, %s32
      %p46 = scmp.eq.s32.totalorder %s24, 1
      %p47 = por %p45, %p46
      %p49 = scmp.ne.s32.totalorder %s32, %s48
      %p50 = scmp.eq.s32.totalorder %s24, 0
      %p51 = por %p49, %p50
      %s52 = ssub.s32 %s18, %s25
      %p53 = scmp.eq.s32.totalorder %s52, 0
      %s55 = sadd.s32 %s54, 1
      %s56 = scalar_select %p53, %s54, %s55
      %p59 = pneg %p53
      %p60 = scmp.eq.s32.totalorder %s18, 1
      %p61 = por %p59, %p60
      %p62 = scmp.ne.s32.totalorder %s54, %s57
      %p63 = scmp.eq.s32.totalorder %s18, 0
      %p64 = por %p62, %p63
      %p65 = scmp.ne.s32.totalorder %s54, %s57
      %p66 = scmp.eq.s32.totalorder %s23, 1
      %p67 = por %p65, %p66
      %p68 = scmp.ne.s32.totalorder %s57, %s58
      %p69 = scmp.eq.s32.totalorder %s23, 0
      %p70 = por %p68, %p69
      %p71 = scmp.ne.s32.totalorder %s57, %s58
      %p72 = scmp.eq.s32.totalorder %s24, 1
      %p73 = por %p71, %p72
      %p75 = scmp.ne.s32.totalorder %s58, %s74
      %p76 = scmp.eq.s32.totalorder %s24, 0
      %p77 = por %p75, %p76
      %s79 = sadd.s32 %s78, 1
      %p82 = scmp.eq.s32.totalorder %s18, 1
      %p83 = scmp.ne.s32.totalorder %s78, %s80
      %p84 = scmp.eq.s32.totalorder %s18, 0
      %p85 = por %p83, %p84
      %p86 = scmp.ne.s32.totalorder %s78, %s80
      %p87 = scmp.eq.s32.totalorder %s23, 1
      %p88 = por %p86, %p87
      %p89 = scmp.ne.s32.totalorder %s80, %s81
      %p90 = scmp.eq.s32.totalorder %s23, 0
      %p91 = por %p89, %p90
      %p92 = scmp.ne.s32.totalorder %s80, %s81
      %p93 = scmp.eq.s32.totalorder %s24, 1
      %p94 = por %p92, %p93
      %p96 = scmp.ne.s32.totalorder %s81, %s95
      %p97 = scmp.eq.s32.totalorder %s24, 0
      %p98 = por %p96, %p97
      %s99 = ssub.s32 %s18, %s25
      %p100 = scmp.eq.s32.totalorder %s99, 0
      %s102 = sadd.s32 %s101, 1
      %s103 = scalar_select %p100, %s101, %s102
      %p106 = pneg %p100
      %p107 = scmp.eq.s32.totalorder %s18, 1
      %p108 = por %p106, %p107
      %p109 = scmp.ne.s32.totalorder %s101, %s104
      %p110 = scmp.eq.s32.totalorder %s18, 0
      %p111 = por %p109, %p110
      %p112 = scmp.ne.s32.totalorder %s101, %s104
      %p113 = scmp.eq.s32.totalorder %s23, 1
      %p114 = por %p112, %p113
      %p115 = scmp.ne.s32.totalorder %s104, %s105
      %p116 = scmp.eq.s32.totalorder %s23, 0
      %p117 = por %p115, %p116
      %p118 = scmp.ne.s32.totalorder %s104, %s105
      %p119 = scmp.eq.s32.totalorder %s24, 1
      %p120 = por %p118, %p119
      %p122 = scmp.ne.s32.totalorder %s105, %s121
      %p123 = scmp.eq.s32.totalorder %s24, 0
      %p124 = por %p122, %p123
      %p125 = scmp.le.s32.totalorder 1, %s18
      %p126 = scmp.lt.s32.totalorder %s18, 3
      %p127 = pnand %p125, %p126
      %p128 = pneg %p127
      // Predicated region
      $region9: #{tpu_custom_call.1} parent=5 // pred_check
        _
      $region10: #{tpu_custom_call.1} parent=5 // pred_check_branch
        %130 = sbr.rel (%p127) target = $region12
      $region11: #{tpu_custom_call.1} parent=5 // pred_region
        %s131 = ssub.s32 %s18, 1
        // Predicated region
        $region13: #{tpu_custom_call.1} parent=11 // pred_check
          %p132 = pneg %p91
        $region14: #{tpu_custom_call.1} parent=11 // pred_check_branch
          %134 = sbr.rel (%p132) target = $region16
        $region15: #{tpu_custom_call.1} parent=11 // pred_region
          %136 = vsyncadd [#allocation6], 0
          %s137 = sshll.u32 %s2, 4
          %s138 = int_to_ptr.hbm [resolvable:$true] %s137
          %s139 = sshll.u32 [#allocation7], 4
          %s140 = int_to_ptr.vmem [resolvable:$true] %s139
          %145 = dma.hbm_to_vmem [thread:$0]  %s138, 2688, %s140, [#allocation6], 128, 128, 8
        $region16: #{tpu_custom_call.1} parent=11 // pred_fallthru
          _
      $region12: #{tpu_custom_call.1} parent=5 // pred_fallthru
        _
      %p146 = scmp.lt.s32.totalorder %s18, 2
      // Predicated region
      $region17: #{tpu_custom_call.1} parent=5 // pred_check
        %p147 = pneg %p146
      $region18: #{tpu_custom_call.1} parent=5 // pred_check_branch
        %149 = sbr.rel (%p147) target = $region20
      $region19: #{tpu_custom_call.1} parent=5 // pred_region
        // Predicated region
        $region21: #{tpu_custom_call.1} parent=19 // pred_check
          %p150 = pneg %p38
        $region22: #{tpu_custom_call.1} parent=19 // pred_check_branch
          %152 = sbr.rel (%p150) target = $region24
        $region23: #{tpu_custom_call.1} parent=19 // pred_region
          %s153 = sand.u32 %s28, 1
          %s154 = scalar_lea.sflag [#allocation3], %s153
          %s155 = sand.u32 %s28, 1
          %s156 = smul.addr %s155, 8
          %s157 = scalar_lea.vmem [#allocation2], %s156
          %159 = vsyncadd %s154, 0
          %s160 = smul.addr %s18, 8
          %s161 = scalar_lea.hbm %s0, %s160
          %s163 = sshll.u32 %s161, 4
          %s164 = int_to_ptr.hbm [resolvable:$true] %s163
          %s165 = sshll.u32 %s157, 4
          %s166 = int_to_ptr.vmem [resolvable:$true] %s165
          %168 = dma.hbm_to_vmem [thread:$0]  %s164, 128, %s166, %s154
        $region24: #{tpu_custom_call.1} parent=19 // pred_fallthru
          _
        // Predicated region
        $region25: #{tpu_custom_call.1} parent=19 // pred_check
          %p169 = pneg %p64
        $region26: #{tpu_custom_call.1} parent=19 // pred_check_branch
          %171 = sbr.rel (%p169) target = $region28
        $region27: #{tpu_custom_call.1} parent=19 // pred_region
          %s172 = sand.u32 %s18, 1
          %s173 = scalar_lea.sflag [#allocation6], %s172
          %s174 = sand.u32 %s54, 1
          %s175 = smul.addr %s174, 8
          %s176 = scalar_lea.vmem [#allocation5], %s175
          %178 = vsyncadd %s173, 0
          %s179 = smul.addr %s18, 8
          %s180 = scalar_lea.hbm %s1, %s179
          %s182 = sshll.u32 %s180, 4
          %s183 = int_to_ptr.hbm [resolvable:$true] %s182
          %s184 = sshll.u32 %s176, 4
          %s185 = int_to_ptr.vmem [resolvable:$true] %s184
          %187 = dma.hbm_to_vmem [thread:$0]  %s183, 128, %s185, %s173
        $region28: #{tpu_custom_call.1} parent=19 // pred_fallthru
          _
      $region20: #{tpu_custom_call.1} parent=5 // pred_fallthru
        _
      %p188 = scmp.le.s32.totalorder 1, %s18
      %p189 = scmp.lt.s32.totalorder %s18, 3
      %p190 = pnand %p188, %p189
      %p191 = pneg %p190
      // Predicated region
      $region29: #{tpu_custom_call.1} parent=5 // pred_check
        _
      $region30: #{tpu_custom_call.1} parent=5 // pred_check_branch
        %193 = sbr.rel (%p190) target = $region32
      $region31: #{tpu_custom_call.1} parent=5 // pred_region
        %s194 = ssub.s32 %s18, 1
        %s195 = sand.u32 %s31, 1
        %s196 = scalar_lea.sflag [#allocation3], %s195
        %s197 = sand.u32 %s31, 1
        %s198 = smul.addr %s197, 8
        %s199 = scalar_lea.vmem [#allocation2], %s198
        // Predicated region
        $region33: #{tpu_custom_call.1} parent=31 // pred_check
          %p200 = pneg %p44
        $region34: #{tpu_custom_call.1} parent=31 // pred_check_branch
          %202 = sbr.rel (%p200) target = $region36
        $region35: #{tpu_custom_call.1} parent=31 // pred_region
          %204 = dma.done %s196, 128
        $region36: #{tpu_custom_call.1} parent=31 // pred_fallthru
          _
        %s205 = sand.u32 %s23, 1
        %s206 = scalar_lea.sflag [#allocation6], %s205
        %s207 = sand.u32 %s57, 1
        %s208 = smul.addr %s207, 8
        %s209 = scalar_lea.vmem [#allocation5], %s208
        // Predicated region
        $region37: #{tpu_custom_call.1} parent=31 // pred_check
          %p210 = pneg %p70
        $region38: #{tpu_custom_call.1} parent=31 // pred_check_branch
          %212 = sbr.rel (%p210) target = $region40
        $region39: #{tpu_custom_call.1} parent=31 // pred_region
          %214 = dma.done %s206, 128
        $region40: #{tpu_custom_call.1} parent=31 // pred_fallthru
          _
        // Predicated region
        $region41: #{tpu_custom_call.1} parent=31 // pred_check
          %p215 = pneg %p91
        $region42: #{tpu_custom_call.1} parent=31 // pred_check_branch
          %217 = sbr.rel (%p215) target = $region44
        $region43: #{tpu_custom_call.1} parent=31 // pred_region
          %219 = dma.done [#allocation6], 2688
        $region44: #{tpu_custom_call.1} parent=31 // pred_fallthru
          _
        %s220 = sand.u32 %s31, 1
        %s221 = scalar_lea.sflag [#allocation3], %s220
        %s222 = sand.u32 %s31, 1
        %s223 = smul.addr %s222, 8
        %s224 = scalar_lea.vmem [#allocation2], %s223
        %p225 = pneg %p44
        %p226 = pneg %p41
        %s227 = sand.u32 %s23, 1
        %s228 = scalar_lea.sflag [#allocation6], %s227
        %s229 = sand.u32 %s57, 1
        %s230 = smul.addr %s229, 8
        %s231 = scalar_lea.vmem [#allocation5], %s230
        %p232 = pneg %p70
        %p233 = pneg %p67
        %p234 = pneg %p91
        %p235 = pneg %p88
        %p236 = pneg %p117
        %p237 = pneg %p114
        %s238 = sand.u32 %s104, 1
        %s239 = scalar_lea.sflag [#allocation4], %s238
        %s240 = sand.u32 %s104, 1
        %s241 = smul.addr %s240, 8
        %s242 = scalar_lea.vmem [#allocation8], %s241
        %v243 = vld [vmem:[%s199] sm:$0xff]
        %v244 = vld [vmem:[%s209] sm:$0xff]
        %v245 = vld [vmem:[#allocation7] sm:$0xff]
        %v246 = vld [vmem:[#allocation7 + $0x8] sm:$0xff]
        %v247 = vld [vmem:[#allocation7 + $0x10] sm:$0xff]
        %v248 = vld [vmem:[#allocation7 + $0x18] sm:$0xff]
        %v249 = vld [vmem:[#allocation7 + $0x20] sm:$0x1]
        %v250 = vld [vmem:[#allocation7 + $0x28] sm:$0xff]
        %v251 = vld [vmem:[#allocation7 + $0x30] sm:$0xff]
        %v252 = vld [vmem:[#allocation7 + $0x38] sm:$0xff]
        %v253 = vld [vmem:[#allocation7 + $0x40] sm:$0xff]
        %v254 = vld [vmem:[#allocation7 + $0x21] sm:$0x1]
        %v255 = vld [vmem:[#allocation7 + $0x22] sm:$0x1]
        %v256 = vld [vmem:[#allocation7 + $0x23] sm:$0x1]
        %v257 = vld [vmem:[#allocation7 + $0x48] sm:$0xff]
        %v258 = vld [vmem:[#allocation7 + $0x50] sm:$0xff]
        %v259 = vld [vmem:[#allocation7 + $0x58] sm:$0xff]
        %v260 = vld [vmem:[#allocation7 + $0x60] sm:$0xff]
        %v261 = vld [vmem:[#allocation7 + $0x24] sm:$0x1]
        %v262 = vld [vmem:[#allocation7 + $0x68] sm:$0xff]
        %v263 = vld [vmem:[#allocation7 + $0x70] sm:$0xff]
        %v264 = vld [vmem:[#allocation7 + $0x78] sm:$0xff]
        %v265 = vld [vmem:[#allocation7 + $0x80] sm:$0xff]
        %v266 = vld [vmem:[#allocation7 + $0x88] sm:$0xff]
        %v267 = vld [vmem:[#allocation7 + $0x90] sm:$0xff]
        %v268 = vld [vmem:[#allocation7 + $0x98] sm:$0xff]
        %v269 = vld [vmem:[#allocation7 + $0xa0] sm:$0xff]
        %v270 = vld [vmem:[#allocation7 + $0x25] sm:$0x1]
        %v271 = vld [vmem:[#allocation7 + $0x26] sm:$0x1]
        %v272 = vld [vmem:[#allocation7 + $0x27] sm:$0x1]
        %v273 = vperm.slane %v249, 0
        %vm274 = vcmask 261120
        %v276 = vsel %vm274, %v243, 0
        %278 = vmatpush.msra.mxu0 0.0
        %279 = vmatpush.msra.mxu0 0.0
        %280 = vmatpush.msra.mxu0 0.0
        %281 = vmatpush.msra.mxu0 0.0
        %282 = vmatpush.msra.mxu0 0.0
        %283 = vmatpush.msra.mxu0 0.0
        %284 = vmatpush.msra.mxu0 0.0
        %285 = vmatpush.msra.mxu0 0.0
        %286 = vmatpush.msra.mxu0 0.0
        %287 = vmatpush.msra.mxu0 0.0
        %288 = vmatpush.msra.mxu0 0.0
        %289 = vmatpush.msra.mxu0 0.0
        %290 = vmatpush.msra.mxu0 %v248
        %291 = vmatpush.msra.mxu0 %v247
        %292 = vmatpush.msra.mxu0 %v246
        %293 = vmatpush.msra.mxu0 %v245
        %294 = vmatmul.f32.gmra.mxu0 %v276
        %v295 = vpop.f32.mrf.mxu0
        %v296 = vadd.f32 %v273, %v295
        %297 = vdwg.mxu0
        %299 = vrot.lane.b32.xlu0 %v296, 96
        %v300 = vpop.permute.xlu0 %299
        %vm301 = vcmask 64512
        %v302 = vsel %vm301, %v296, 0
        %v304 = vsel %vm301, %v300, 0
        %306 = vmatpush.xpose.msra.mxu0 0.0
        %307 = vmatpush.xpose.msra.mxu0 0.0
        %308 = vmatpush.xpose.msra.mxu0 0.0
        %309 = vmatpush.xpose.msra.mxu0 0.0
        %310 = vmatpush.xpose.msra.mxu0 0.0
        %311 = vmatpush.xpose.msra.mxu0 0.0
        %312 = vmatpush.xpose.msra.mxu0 0.0
        %313 = vmatpush.xpose.msra.mxu0 0.0
        %314 = vmatpush.xpose.msra.mxu0 0.0
        %315 = vmatpush.xpose.msra.mxu0 0.0
        %316 = vmatpush.xpose.msra.mxu0 0.0
        %317 = vmatpush.xpose.msra.mxu0 0.0
        %318 = vmatpush.xpose.msra.mxu0 0.0
        %319 = vmatpush.xpose.msra.mxu0 0.0
        %320 = vmatpush.xpose.msra.mxu0 0.0
        %321 = vmatpush.xpose.msra.mxu0 %v304
        %322 = vmatmul.f32.gmra.mxu0 %v302
        %v323 = vpop.f32.mrf.mxu0
        %v324 = vadd.f32 %v244, %v323
        %325 = vdwg.mxu0
        %v326 = vsel %vm301, %v324, -inf
        %327 = vmax.xlane.f32.xlu0 %v326
        %v328 = vpop.xlane.xlu0 %327
        %v329 = vsub.f32 %v324, %v328
        %v330 = vmul.f32 %v329, 1.442695
        %v331 = vpow.pop %v330
        %v332 = vsel %vm301, %v331, 0.0
        %333 = vadd.xlane.f32.xlu0 %v332
        %v334 = vpop.xlane.xlu0 %333
        %v335 = vrcp.pop %v334
        %v336 = vmul.f32 %v334, %v335
        %v337 = vsub.f32 1.0, %v336
        %v338 = vmul.f32 %v335, %v337
        %v339 = vadd.f32 %v335, %v338
        %vm340 = vweird.f32 %v334
        %vm341 = vweird.f32 %v335
        %vm342 = vmor %vm340, %vm341
        %v343 = vsel %vm342, %v335, %v339
        %v344 = vand.u32 2147483647, %v334
        %vm345 = vcmp.eq.f32.partialorder %v344, 8.507059e+37
        %v346 = vand.u32 %v334, 2147483648
        %v347 = vor.u32 1.1754944e-38, %v346
        %v348 = vsel %vm345, %v347, %v343
        %v349 = vmul.f32 %v331, %v348
        %350 = vrot.lane.b32.xlu0 %v296, 64
        %v351 = vpop.permute.xlu0 %350
        %v354 = vsel %vm301, %v349, 0
        %356 = vmatpush.msra.mxu0 0.0
        %357 = vmatpush.msra.mxu0 0.0
        %358 = vmatpush.msra.mxu0 0.0
        %359 = vmatpush.msra.mxu0 0.0
        %360 = vmatpush.msra.mxu0 0.0
        %361 = vmatpush.msra.mxu0 0.0
        %362 = vmatpush.msra.mxu0 0.0
        %363 = vmatpush.msra.mxu0 0.0
        %364 = vmatpush.msra.mxu0 0.0
        %365 = vmatpush.msra.mxu0 0.0
        %366 = vmatpush.msra.mxu0 0.0
        %367 = vmatpush.msra.mxu0 0.0
        %368 = vmatpush.msra.mxu0 0.0
        %369 = vmatpush.msra.mxu0 0.0
        %370 = vmatpush.msra.mxu0 0.0
        %371 = vmatpush.msra.mxu0 %v351
        %372 = vmatmul.f32.gmra.mxu0 %v354
        %v373 = vpop.f32.mrf.mxu0
        %v374 = vadd.f32 0.0, %v373
        %375 = vdwg.mxu0
        %376 = vrot.lane.b32.xlu0 %v296, 120
        %v377 = vpop.permute.xlu0 %376
        %378 = vrot.lane.b32.xlu0 %v296, 88
        %v379 = vpop.permute.xlu0 %378
        %v380 = vsel %vm301, %v377, 0
        %v382 = vsel %vm301, %v379, 0
        %384 = vmatpush.xpose.msra.mxu0 0.0
        %385 = vmatpush.xpose.msra.mxu0 0.0
        %386 = vmatpush.xpose.msra.mxu0 0.0
        %387 = vmatpush.xpose.msra.mxu0 0.0
        %388 = vmatpush.xpose.msra.mxu0 0.0
        %389 = vmatpush.xpose.msra.mxu0 0.0
        %390 = vmatpush.xpose.msra.mxu0 0.0
        %391 = vmatpush.xpose.msra.mxu0 0.0
        %392 = vmatpush.xpose.msra.mxu0 0.0
        %393 = vmatpush.xpose.msra.mxu0 0.0
        %394 = vmatpush.xpose.msra.mxu0 0.0
        %395 = vmatpush.xpose.msra.mxu0 0.0
        %396 = vmatpush.xpose.msra.mxu0 0.0
        %397 = vmatpush.xpose.msra.mxu0 0.0
        %398 = vmatpush.xpose.msra.mxu0 0.0
        %399 = vmatpush.xpose.msra.mxu0 %v382
        %400 = vmatmul.f32.gmra.mxu0 %v380
        %v401 = vpop.f32.mrf.mxu0
        %v402 = vadd.f32 %v244, %v401
        %403 = vdwg.mxu0
        %v404 = vsel %vm301, %v402, -inf
        %405 = vmax.xlane.f32.xlu0 %v404
        %v406 = vpop.xlane.xlu0 %405
        %v407 = vsub.f32 %v402, %v406
        %v408 = vmul.f32 %v407, 1.442695
        %v409 = vpow.pop %v408
        %v410 = vsel %vm301, %v409, 0.0
        %411 = vadd.xlane.f32.xlu0 %v410
        %v412 = vpop.xlane.xlu0 %411
        %v413 = vrcp.pop %v412
        %v414 = vmul.f32 %v412, %v413
        %v415 = vsub.f32 1.0, %v414
        %v416 = vmul.f32 %v413, %v415
        %v417 = vadd.f32 %v413, %v416
        %vm418 = vweird.f32 %v412
        %vm419 = vweird.f32 %v413
        %vm420 = vmor %vm418, %vm419
        %v421 = vsel %vm420, %v413, %v417
        %v422 = vand.u32 2147483647, %v412
        %vm423 = vcmp.eq.f32.partialorder %v422, 8.507059e+37
        %v424 = vand.u32 %v412, 2147483648
        %v425 = vor.u32 1.1754944e-38, %v424
        %v426 = vsel %vm423, %v425, %v421
        %v427 = vmul.f32 %v409, %v426
        %428 = vrot.lane.b32.xlu0 %v296, 56
        %v429 = vpop.permute.xlu0 %428
        %v432 = vsel %vm301, %v427, 0
        %434 = vmatpush.msra.mxu0 0.0
        %435 = vmatpush.msra.mxu0 0.0
        %436 = vmatpush.msra.mxu0 0.0
        %437 = vmatpush.msra.mxu0 0.0
        %438 = vmatpush.msra.mxu0 0.0
        %439 = vmatpush.msra.mxu0 0.0
        %440 = vmatpush.msra.mxu0 0.0
        %441 = vmatpush.msra.mxu0 0.0
        %442 = vmatpush.msra.mxu0 0.0
        %443 = vmatpush.msra.mxu0 0.0
        %444 = vmatpush.msra.mxu0 0.0
        %445 = vmatpush.msra.mxu0 0.0
        %446 = vmatpush.msra.mxu0 0.0
        %447 = vmatpush.msra.mxu0 0.0
        %448 = vmatpush.msra.mxu0 0.0
        %449 = vmatpush.msra.mxu0 %v429
        %450 = vmatmul.f32.gmra.mxu0 %v432
        %v451 = vpop.f32.mrf.mxu0
        %v452 = vadd.f32 0.0, %v451
        %453 = vdwg.mxu0
        %454 = vrot.lane.b32.xlu0 %v296, 112
        %v455 = vpop.permute.xlu0 %454
        %456 = vrot.lane.b32.xlu0 %v296, 80
        %v457 = vpop.permute.xlu0 %456
        %v458 = vsel %vm301, %v455, 0
        %v460 = vsel %vm301, %v457, 0
        %462 = vmatpush.xpose.msra.mxu0 0.0
        %463 = vmatpush.xpose.msra.mxu0 0.0
        %464 = vmatpush.xpose.msra.mxu0 0.0
        %465 = vmatpush.xpose.msra.mxu0 0.0
        %466 = vmatpush.xpose.msra.mxu0 0.0
        %467 = vmatpush.xpose.msra.mxu0 0.0
        %468 = vmatpush.xpose.msra.mxu0 0.0
        %469 = vmatpush.xpose.msra.mxu0 0.0
        %470 = vmatpush.xpose.msra.mxu0 0.0
        %471 = vmatpush.xpose.msra.mxu0 0.0
        %472 = vmatpush.xpose.msra.mxu0 0.0
        %473 = vmatpush.xpose.msra.mxu0 0.0
        %474 = vmatpush.xpose.msra.mxu0 0.0
        %475 = vmatpush.xpose.msra.mxu0 0.0
        %476 = vmatpush.xpose.msra.mxu0 0.0
        %477 = vmatpush.xpose.msra.mxu0 %v460
        %478 = vmatmul.f32.gmra.mxu0 %v458
        %v479 = vpop.f32.mrf.mxu0
        %v480 = vadd.f32 %v244, %v479
        %481 = vdwg.mxu0
        %v482 = vsel %vm301, %v480, -inf
        %483 = vmax.xlane.f32.xlu0 %v482
        %v484 = vpop.xlane.xlu0 %483
        %v485 = vsub.f32 %v480, %v484
        %v486 = vmul.f32 %v485, 1.442695
        %v487 = vpow.pop %v486
        %v488 = vsel %vm301, %v487, 0.0
        %489 = vadd.xlane.f32.xlu0 %v488
        %v490 = vpop.xlane.xlu0 %489
        %v491 = vrcp.pop %v490
        %v492 = vmul.f32 %v490, %v491
        %v493 = vsub.f32 1.0, %v492
        %v494 = vmul.f32 %v491, %v493
        %v495 = vadd.f32 %v491, %v494
        %vm496 = vweird.f32 %v490
        %vm497 = vweird.f32 %v491
        %vm498 = vmor %vm496, %vm497
        %v499 = vsel %vm498, %v491, %v495
        %v500 = vand.u32 2147483647, %v490
        %vm501 = vcmp.eq.f32.partialorder %v500, 8.507059e+37
        %v502 = vand.u32 %v490, 2147483648
        %v503 = vor.u32 1.1754944e-38, %v502
        %v504 = vsel %vm501, %v503, %v499
        %v505 = vmul.f32 %v487, %v504
        %506 = vrot.lane.b32.xlu0 %v296, 48
        %v507 = vpop.permute.xlu0 %506
        %v510 = vsel %vm301, %v505, 0
        %512 = vmatpush.msra.mxu0 0.0
        %513 = vmatpush.msra.mxu0 0.0
        %514 = vmatpush.msra.mxu0 0.0
        %515 = vmatpush.msra.mxu0 0.0
        %516 = vmatpush.msra.mxu0 0.0
        %517 = vmatpush.msra.mxu0 0.0
        %518 = vmatpush.msra.mxu0 0.0
        %519 = vmatpush.msra.mxu0 0.0
        %520 = vmatpush.msra.mxu0 0.0
        %521 = vmatpush.msra.mxu0 0.0
        %522 = vmatpush.msra.mxu0 0.0
        %523 = vmatpush.msra.mxu0 0.0
        %524 = vmatpush.msra.mxu0 0.0
        %525 = vmatpush.msra.mxu0 0.0
        %526 = vmatpush.msra.mxu0 0.0
        %527 = vmatpush.msra.mxu0 %v507
        %528 = vmatmul.f32.gmra.mxu0 %v510
        %v529 = vpop.f32.mrf.mxu0
        %v530 = vadd.f32 0.0, %v529
        %531 = vdwg.mxu0
        %532 = vrot.lane.b32.xlu0 %v296, 104
        %v533 = vpop.permute.xlu0 %532
        %534 = vrot.lane.b32.xlu0 %v296, 72
        %v535 = vpop.permute.xlu0 %534
        %v536 = vsel %vm301, %v533, 0
        %v538 = vsel %vm301, %v535, 0
        %540 = vmatpush.xpose.msra.mxu0 0.0
        %541 = vmatpush.xpose.msra.mxu0 0.0
        %542 = vmatpush.xpose.msra.mxu0 0.0
        %543 = vmatpush.xpose.msra.mxu0 0.0
        %544 = vmatpush.xpose.msra.mxu0 0.0
        %545 = vmatpush.xpose.msra.mxu0 0.0
        %546 = vmatpush.xpose.msra.mxu0 0.0
        %547 = vmatpush.xpose.msra.mxu0 0.0
        %548 = vmatpush.xpose.msra.mxu0 0.0
        %549 = vmatpush.xpose.msra.mxu0 0.0
        %550 = vmatpush.xpose.msra.mxu0 0.0
        %551 = vmatpush.xpose.msra.mxu0 0.0
        %552 = vmatpush.xpose.msra.mxu0 0.0
        %553 = vmatpush.xpose.msra.mxu0 0.0
        %554 = vmatpush.xpose.msra.mxu0 0.0
        %555 = vmatpush.xpose.msra.mxu0 %v538
        %556 = vmatmul.f32.gmra.mxu0 %v536
        %v557 = vpop.f32.mrf.mxu0
        %v558 = vadd.f32 %v244, %v557
        %559 = vdwg.mxu0
        %v560 = vsel %vm301, %v558, -inf
        %561 = vmax.xlane.f32.xlu0 %v560
        %v562 = vpop.xlane.xlu0 %561
        %v563 = vsub.f32 %v558, %v562
        %v564 = vmul.f32 %v563, 1.442695
        %v565 = vpow.pop %v564
        %v566 = vsel %vm301, %v565, 0.0
        %567 = vadd.xlane.f32.xlu0 %v566
        %v568 = vpop.xlane.xlu0 %567
        %v569 = vrcp.pop %v568
        %v570 = vmul.f32 %v568, %v569
        %v571 = vsub.f32 1.0, %v570
        %v572 = vmul.f32 %v569, %v571
        %v573 = vadd.f32 %v569, %v572
        %vm574 = vweird.f32 %v568
        %vm575 = vweird.f32 %v569
        %vm576 = vmor %vm574, %vm575
        %v577 = vsel %vm576, %v569, %v573
        %v578 = vand.u32 2147483647, %v568
        %vm579 = vcmp.eq.f32.partialorder %v578, 8.507059e+37
        %v580 = vand.u32 %v568, 2147483648
        %v581 = vor.u32 1.1754944e-38, %v580
        %v582 = vsel %vm579, %v581, %v577
        %v583 = vmul.f32 %v565, %v582
        %584 = vrot.lane.b32.xlu0 %v296, 40
        %v585 = vpop.permute.xlu0 %584
        %v588 = vsel %vm301, %v583, 0
        %590 = vmatpush.msra.mxu0 0.0
        %591 = vmatpush.msra.mxu0 0.0
        %592 = vmatpush.msra.mxu0 0.0
        %593 = vmatpush.msra.mxu0 0.0
        %594 = vmatpush.msra.mxu0 0.0
        %595 = vmatpush.msra.mxu0 0.0
        %596 = vmatpush.msra.mxu0 0.0
        %597 = vmatpush.msra.mxu0 0.0
        %598 = vmatpush.msra.mxu0 0.0
        %599 = vmatpush.msra.mxu0 0.0
        %600 = vmatpush.msra.mxu0 0.0
        %601 = vmatpush.msra.mxu0 0.0
        %602 = vmatpush.msra.mxu0 0.0
        %603 = vmatpush.msra.mxu0 0.0
        %604 = vmatpush.msra.mxu0 0.0
        %605 = vmatpush.msra.mxu0 %v585
        %606 = vmatmul.f32.gmra.mxu0 %v588
        %v607 = vpop.f32.mrf.mxu0
        %v608 = vadd.f32 0.0, %v607
        %609 = vdwg.mxu0
        %611 = vrot.lane.b32.xlu0 %v452, 8
        %v612 = vpop.permute.xlu0 %611
        %615 = vrot.lane.b32.xlu0 %v530, 16
        %v616 = vpop.permute.xlu0 %615
        %619 = vrot.lane.b32.xlu0 %v608, 24
        %v620 = vpop.permute.xlu0 %619
        %v622 = vsel %vm301, %v374, %v612
        %vm623 = vcmask 130048
        %v624 = vsel %vm623, %v622, %v616
        %vm625 = vcmask 195584
        %v626 = vsel %vm625, %v624, %v620
        %v627 = vperm.slane %v254, 0
        %v629 = vsel %vm274, %v626, 0
        %631 = vmatpush.msra.mxu0 0.0
        %632 = vmatpush.msra.mxu0 0.0
        %633 = vmatpush.msra.mxu0 0.0
        %634 = vmatpush.msra.mxu0 0.0
        %635 = vmatpush.msra.mxu0 0.0
        %636 = vmatpush.msra.mxu0 0.0
        %637 = vmatpush.msra.mxu0 0.0
        %638 = vmatpush.msra.mxu0 0.0
        %639 = vmatpush.msra.mxu0 0.0
        %640 = vmatpush.msra.mxu0 0.0
        %641 = vmatpush.msra.mxu0 0.0
        %642 = vmatpush.msra.mxu0 0.0
        %643 = vmatpush.msra.mxu0 %v253
        %644 = vmatpush.msra.mxu0 %v252
        %645 = vmatpush.msra.mxu0 %v251
        %646 = vmatpush.msra.mxu0 %v250
        %647 = vmatmul.f32.gmra.mxu0 %v629
        %v648 = vpop.f32.mrf.mxu0
        %v649 = vadd.f32 %v627, %v648
        %650 = vdwg.mxu0
        %v651 = vadd.f32 %v649, %v243
        %v652 = vsel %vm274, %v651, 0.0
        %653 = vadd.xlane.f32.xlu0 %v652
        %v654 = vpop.xlane.xlu0 %653
        %v655 = vrcp.pop 32.0
        %v656 = vmul.f32 32.0, %v655
        %v657 = vsub.f32 1.0, %v656
        %v658 = vmul.f32 %v655, %v657
        %v659 = vadd.f32 %v655, %v658
        %vm660 = vweird.f32 %v655
        %v661 = vsel %vm660, %v655, %v659
        %v662 = vmul.f32 %v654, %v661
        %v663 = vsub.f32 %v651, %v662
        %v664 = vmul.f32 %v663, %v663
        %v665 = vsel %vm274, %v664, 0.0
        %666 = vadd.xlane.f32.xlu0 %v665
        %v667 = vpop.xlane.xlu0 %666
        %v668 = vmul.f32 %v667, %v661
        %v669 = vadd.f32 %v668, 1e-06
        %v670 = vrsqrt.pop %v669
        %v671 = vmul.f32 %v670, %v669
        %v672 = vmul.f32 %v671, %v670
        %v673 = vmul.f32 0.5, %v672
        %v674 = vsub.f32 1.5, %v673
        %v675 = vmul.f32 %v670, %v674
        %vm676 = vweird.f32 %v669
        %vm677 = vweird.f32 %v670
        %vm678 = vmor %vm676, %vm677
        %v679 = vsel %vm678, %v670, %v675
        %v680 = vmul.f32 %v663, %v679
        %v681 = vperm.slane %v255, 0
        %v682 = vmul.f32 %v680, %v681
        %v683 = vperm.slane %v256, 0
        %v684 = vadd.f32 %v682, %v683
        %v685 = vperm.slane %v261, 0
        %v687 = vsel %vm274, %v684, 0
        %689 = vmatpush.msra.mxu0 0.0
        %690 = vmatpush.msra.mxu0 0.0
        %691 = vmatpush.msra.mxu0 0.0
        %692 = vmatpush.msra.mxu0 0.0
        %693 = vmatpush.msra.mxu0 0.0
        %694 = vmatpush.msra.mxu0 0.0
        %695 = vmatpush.msra.mxu0 0.0
        %696 = vmatpush.msra.mxu0 0.0
        %697 = vmatpush.msra.mxu0 0.0
        %698 = vmatpush.msra.mxu0 0.0
        %699 = vmatpush.msra.mxu0 0.0
        %700 = vmatpush.msra.mxu0 0.0
        %701 = vmatpush.msra.mxu0 %v260
        %702 = vmatpush.msra.mxu0 %v259
        %703 = vmatpush.msra.mxu0 %v258
        %704 = vmatpush.msra.mxu0 %v257
        %705 = vmatmul.f32.gmra.mxu0 %v687
        %v706 = vpop.f32.mrf.mxu0
        %v707 = vadd.f32 %v685, %v706
        %708 = vdwg.mxu0
        %v709 = vmul.f32 %v707, %v707
        %v710 = vmul.f32 %v707, %v709
        %v711 = vmul.f32 %v710, 0.044715
        %v712 = vadd.f32 %v707, %v711
        %v713 = vmul.f32 %v712, 0.7978846
        %v714 = vtanh.pop %v713
        %v715 = vadd.f32 %v714, 1.0
        %v716 = vmul.f32 %v715, 0.5
        %v717 = vmul.f32 %v707, %v716
        %v718 = vperm.slane %v270, 0
        %vm719 = vcmask 523264
        %v721 = vsel %vm719, %v717, 0
        %723 = vmatpush.msra.mxu0 0.0
        %724 = vmatpush.msra.mxu0 0.0
        %725 = vmatpush.msra.mxu0 0.0
        %726 = vmatpush.msra.mxu0 0.0
        %727 = vmatpush.msra.mxu0 0.0
        %728 = vmatpush.msra.mxu0 0.0
        %729 = vmatpush.msra.mxu0 0.0
        %730 = vmatpush.msra.mxu0 0.0
        %731 = vmatpush.msra.mxu0 %v269
        %732 = vmatpush.msra.mxu0 %v268
        %733 = vmatpush.msra.mxu0 %v267
        %734 = vmatpush.msra.mxu0 %v266
        %735 = vmatpush.msra.mxu0 %v265
        %736 = vmatpush.msra.mxu0 %v264
        %737 = vmatpush.msra.mxu0 %v263
        %738 = vmatpush.msra.mxu0 %v262
        %739 = vmatmul.f32.gmra.mxu0 %v721
        %v740 = vpop.f32.mrf.mxu0
        %v741 = vadd.f32 %v718, %v740
        %742 = vdwg.mxu0
        %v743 = vadd.f32 %v741, %v684
        %v744 = vsel %vm274, %v743, 0.0
        %745 = vadd.xlane.f32.xlu0 %v744
        %v746 = vpop.xlane.xlu0 %745
        %v747 = vmul.f32 %v746, %v661
        %v748 = vsub.f32 %v743, %v747
        %v749 = vmul.f32 %v748, %v748
        %v750 = vsel %vm274, %v749, 0.0
        %751 = vadd.xlane.f32.xlu0 %v750
        %v752 = vpop.xlane.xlu0 %751
        %v753 = vmul.f32 %v752, %v661
        %v754 = vadd.f32 %v753, 1e-06
        %v755 = vrsqrt.pop %v754
        %v756 = vmul.f32 %v755, %v754
        %v757 = vmul.f32 %v756, %v755
        %v758 = vmul.f32 0.5, %v757
        %v759 = vsub.f32 1.5, %v758
        %v760 = vmul.f32 %v755, %v759
        %vm761 = vweird.f32 %v754
        %vm762 = vweird.f32 %v755
        %vm763 = vmor %vm761, %vm762
        %v764 = vsel %vm763, %v755, %v760
        %v765 = vmul.f32 %v748, %v764
        %v766 = vperm.slane %v271, 0
        %v767 = vmul.f32 %v765, %v766
        %v768 = vperm.slane %v272, 0
        %v769 = vadd.f32 %v767, %v768
        %770 = vst.msk [vmem:[%s242] sm:$0xff] %vm274, %v769
        %s771 = sand.u32 %s104, 1
        %s772 = scalar_lea.sflag [#allocation4], %s771
        %s773 = sand.u32 %s104, 1
        %s774 = smul.addr %s773, 8
        %s775 = scalar_lea.vmem [#allocation8], %s774
        // Predicated region
        $region45: #{tpu_custom_call.1} parent=31 // pred_check
          %p776 = pneg %p114
        $region46: #{tpu_custom_call.1} parent=31 // pred_check_branch
          %778 = sbr.rel (%p776) target = $region48
        $region47: #{tpu_custom_call.1} parent=31 // pred_region
          %780 = vsyncadd %s772, 0
          %s781 = smul.addr %s23, 8
          %s782 = scalar_lea.hbm %s3, %s781
          %s784 = sshll.u32 %s775, 4
          %s785 = int_to_ptr.vmem [resolvable:$true] %s784
          %s786 = sshll.u32 %s782, 4
          %s787 = int_to_ptr.hbm [resolvable:$true] %s786
          %789 = dma.vmem_to_hbm [thread:$0]  %s785, 128, %s787, %s772
        $region48: #{tpu_custom_call.1} parent=31 // pred_fallthru
          _
      $region32: #{tpu_custom_call.1} parent=5 // pred_fallthru
        _
      %p790 = scmp.le.s32.totalorder 2, %s18
      // Predicated region
      $region49: #{tpu_custom_call.1} parent=5 // pred_check
        %p791 = pneg %p790
      $region50: #{tpu_custom_call.1} parent=5 // pred_check_branch
        %793 = sbr.rel (%p791) target = $region52
      $region51: #{tpu_custom_call.1} parent=5 // pred_region
        %s794 = ssub.s32 %s18, 2
        // Predicated region
        $region53: #{tpu_custom_call.1} parent=51 // pred_check
          %p795 = pneg %p120
        $region54: #{tpu_custom_call.1} parent=51 // pred_check_branch
          %797 = sbr.rel (%p795) target = $region56
        $region55: #{tpu_custom_call.1} parent=51 // pred_region
          %s798 = sand.u32 %s105, 1
          %s799 = scalar_lea.sflag [#allocation4], %s798
          %s800 = sand.u32 %s105, 1
          %s801 = smul.addr %s800, 8
          %s802 = scalar_lea.vmem [#allocation8], %s801
          %804 = dma.done %s799, 128
        $region56: #{tpu_custom_call.1} parent=51 // pred_fallthru
          _
      $region52: #{tpu_custom_call.1} parent=5 // pred_fallthru
        _
    $region6: #{tpu_custom_call.1} parent=1 // loop_footer
      %s22 = sadd.s32 1, %s18
    $region7: #{tpu_custom_call.1} parent=1 // loop_footer_branch
      %17 = sbr.rel target = $region3
    $region8: #{tpu_custom_call.1} parent=1 // loop_exit
      _
    %805 = vsyncpa [#allocation3], 1
    %s806 = scalar_lea.sflag [#allocation3], 1
    %807 = vsyncpa %s806, 1
    %808 = vsyncpa [#allocation6], 1
    %s809 = scalar_lea.sflag [#allocation6], 1
    %810 = vsyncpa %s809, 1
    %811 = vsyncpa [#allocation4], 1
    %s812 = scalar_lea.sflag [#allocation4], 1
    %813 = vsyncpa %s812, 1

</llo_original>
